<compile_context>
chip_gen: v7x
topology: tpu7x:2x2x1
jax: 0.10.0
libtpu: 0.0.40
codegen_flags: <defaults>
</compile_context>

<pallas_src>
import jax
import jax.numpy as jnp
from jax import lax
from jax.experimental import pallas as pl
from jax.experimental.pallas import tpu as pltpu

EPS = 1e-5   # PyTorch LayerNorm default
LANE = 128


def _round_up(a, m):
    return ((a + m - 1) // m) * m


def mlp_kernel(xt_ref,                      # [in_dim, tile_b]   x^T tile
               w1t_ref, b1t_ref,            # [d1, in_dim], [d1, 1]  fused linear_in @ layers[0]
               g_ref, beta_ref,             # [d1, 1]  layernorm gamma / beta
               wot_ref, wrt_ref, b2t_ref,   # [out_dim, d1], [out_dim, in_dim], [out_dim, 1]
               ot_ref):                     # [out_dim, tile_b]  out^T tile (lane-dense)
    xt = xt_ref[...].astype(jnp.float32)

    # h^T = W1^T @ x^T + b1^T   (linear_in folded into layers[0]; dropout is identity in eval)
    h = jnp.dot(w1t_ref[...], xt, preferred_element_type=jnp.float32) + b1t_ref[...]

    # LayerNorm over the feature (sublane) axis; batch fills all 128 lanes.
    # One-pass statistics: var = E[h^2] - mu^2 (biased, eps=1e-5, matches PyTorch).
    d1 = h.shape[0]
    inv_d = 1.0 / d1
    mu = jnp.sum(h, axis=0, keepdims=True) * inv_d
    ex2 = jnp.sum(h * h, axis=0, keepdims=True) * inv_d
    var = jnp.maximum(ex2 - mu * mu, 0.0)
    h = (h - mu) * lax.rsqrt(var + EPS)
    h = h * g_ref[...] + beta_ref[...]
    h = jnp.maximum(h, 0.0)                 # ReLU
    # TODO(synk): training-mode dropout (stochastic masking) not implemented; eval-mode identity.

    # out^T = W_out^T @ h^T + W_res^T @ x^T + (b_out + b_res)^T
    # Two matmuls instead of a lane-concat (MXU is nearly idle, second push is free).
    out = (jnp.dot(wot_ref[...], h, preferred_element_type=jnp.float32)
           + jnp.dot(wrt_ref[...], xt, preferred_element_type=jnp.float32)
           + b2t_ref[...])

    ot_ref[...] = out.astype(ot_ref.dtype)  # dense [out_dim, tile_b] store, no padding


def mlp_forward(x, params, *, tile_b=None):
    B, in_dim = x.shape
    d1 = params["w_h"].shape[1]
    out_dim = params["w_out"].shape[1]

    # ---- wrapper-side algebraic fusion (valid while dropout is identity) ----
    # Weights pre-transposed to [out, in] so every kernel matmul is a plain
    # [M, K] @ [K, tile_b] with no in-kernel transposes of the big tensor.
    w1t = (params["w_in"] @ params["w_h"]).T                      # [d1, in_dim]
    b1t = (params["b_in"] @ params["w_h"] + params["b_h"]).T      # [d1, 1]
    g_t = params["gamma"].T                                       # [d1, 1]
    beta_t = params["beta"].T                                     # [d1, 1]
    wot = params["w_out"].T                                       # [out_dim, d1]
    wrt = params["w_res"].T                                       # [out_dim, in_dim]
    b2t = (params["b_out"] + params["b_res"]).T                   # [out_dim, 1]

    # ---- batch tiling: batch rides the lane axis (multiples of 128) ----
    if tile_b is None:
        tile_b = 8192                       # big tiles amortize ~0.35us/step pipeline overhead
        if B > LANE:                        # guarantee >= 2 grid tiles so the "parallel"
            tile_b = min(tile_b,            # batch axis can shard across both v7x TensorCores
                         _round_up(-(-B // 2), LANE))
    tile_b = max(LANE, _round_up(tile_b, LANE))
    tile_b = min(tile_b, max(LANE, _round_up(B, LANE)))

    n_tiles = -(-B // tile_b)               # ceil div
    B_pad = n_tiles * tile_b

    # Transpose to [in_dim, B]; ragged-batch pad fuses into the same copy under jit.
    x_t = x.T if B_pad == B else jnp.pad(x.T, ((0, 0), (0, B_pad - B)))

    full = lambda shape: pl.BlockSpec(shape, lambda i: (0, 0))

    out_t = pl.pallas_call(
        mlp_kernel,
        out_shape=jax.ShapeDtypeStruct((out_dim, B_pad), x.dtype),
        grid_spec=pltpu.PrefetchScalarGridSpec(
            num_scalar_prefetch=0,
            grid=(n_tiles,),
            in_specs=[
                pl.BlockSpec((in_dim, tile_b), lambda i: (0, i)),   # x^T tile
                full((d1, in_dim)), full((d1, 1)),                  # fused in->hidden
                full((d1, 1)), full((d1, 1)),                       # layernorm gamma / beta
                full((out_dim, d1)), full((out_dim, in_dim)),       # out / residual weights
                full((out_dim, 1)),                                 # fused out bias
            ],
            out_specs=pl.BlockSpec((out_dim, tile_b), lambda i: (0, i)),
        ),
        compiler_params=pltpu.CompilerParams(
            dimension_semantics=("parallel",),
            # Per-tile working set < 4 MiB even at tile_b=8192; 32 MiB limit is
            # safe on v5e/v6e (128 MiB VMEM) and on v7x (64 MiB, 2 TCs / chip).
            vmem_limit_bytes=32 * 1024 * 1024),
    )(x_t, w1t, b1t, g_t, beta_t, wot, wrt, b2t)

    # [out_dim, B_pad] -> [B, out_dim]; slice + transpose fuse into one copy under jit.
    return out_t[:, :B].T


def init_params(key, in_dim, layer_dims, out_dim):
    """Deterministic init mimicking nn.Linear uniform(-1/sqrt(fan_in), 1/sqrt(fan_in)).
    Weights stored already transposed to [in, out]."""
    def linear(k, fan_in, fan_out):
        k1, k2 = jax.random.split(k)
        bound = 1.0 / jnp.sqrt(fan_in)
        w = jax.random.uniform(k1, (fan_in, fan_out), jnp.float32, -bound, bound)
        b = jax.random.uniform(k2, (1, fan_out), jnp.float32, -bound, bound)
        return w, b

    k = jax.random.split(key, 4)
    d0, d1 = layer_dims[0], layer_dims[1]
    w_in, b_in = linear(k[0], in_dim, d0)
    w_h, b_h = linear(k[1], d0, d1)
    w_out, b_out = linear(k[2], d1, out_dim)
    w_res, b_res = linear(k[3], in_dim, out_dim)
    return dict(
        w_in=w_in, b_in=b_in,
        w_h=w_h, b_h=b_h,
        gamma=jnp.ones((1, d1), jnp.float32),
        beta=jnp.zeros((1, d1), jnp.float32),
        w_out=w_out, b_out=b_out,
        w_res=w_res, b_res=b_res,
    )


def mlp_reference(x, p):
    h = x @ p["w_in"] + p["b_in"]
    h = h @ p["w_h"] + p["b_h"]
    mu = jnp.mean(h, axis=-1, keepdims=True)
    var = jnp.mean((h - mu) ** 2, axis=-1, keepdims=True)
    h = (h - mu) / jnp.sqrt(var + EPS) * p["gamma"] + p["beta"]
    h = jnp.maximum(h, 0.0)
    out = h @ p["w_out"] + p["b_out"]
    return out + x @ p["w_res"] + p["b_res"]


if __name__ == "__main__":
    in_dim, layer_dims, out_dim = 16, [32, 32], 8
    B = 16

    key = jax.random.PRNGKey(0)
    kx, kp = jax.random.split(key)
    x = jax.random.normal(kx, (B, in_dim), jnp.float32)
    params = init_params(kp, in_dim, layer_dims, out_dim)

    fwd = jax.jit(mlp_forward)
    out = fwd(x, params)
    out = jax.block_until_ready(out)

    ref = mlp_reference(x, params)
    assert out.shape == (B, out_dim)
    assert jnp.allclose(out, ref, atol=1e-4, rtol=1e-4)

    print("KERNEL_OK")
</pallas_src>

<mosaic_0001>
module attributes {stable_mosaic.version = 11 : i64} {
  func.func @mlp_kernel(%arg0: i32, %arg1: memref<16x128xf32, #tpu.memory_space<vmem>>, %arg2: memref<32x16xf32, #tpu.memory_space<vmem>>, %arg3: memref<32x1xf32, #tpu.memory_space<vmem>>, %arg4: memref<32x1xf32, #tpu.memory_space<vmem>>, %arg5: memref<32x1xf32, #tpu.memory_space<vmem>>, %arg6: memref<8x32xf32, #tpu.memory_space<vmem>>, %arg7: memref<8x16xf32, #tpu.memory_space<vmem>>, %arg8: memref<8x1xf32, #tpu.memory_space<vmem>>, %arg9: memref<8x128xf32, #tpu.memory_space<vmem>>) attributes {dimension_semantics = [#tpu.dimension_semantics<parallel>], iteration_bounds = array<i64: 1>, scalar_prefetch = 0 : i64, scratch_operands = 0 : i64, tpu.core_type = #tpu.core_type<tc>, window_params = [{transform_indices = @transform_0, window_bounds = array<i64: 16, 128>}, {pipeline_mode = #tpu.pipeline_mode<synchronous>, transform_indices = @transform_1, window_bounds = array<i64: 32, 16>}, {pipeline_mode = #tpu.pipeline_mode<synchronous>, transform_indices = @transform_2, window_bounds = array<i64: 32, 1>}, {pipeline_mode = #tpu.pipeline_mode<synchronous>, transform_indices = @transform_3, window_bounds = array<i64: 32, 1>}, {pipeline_mode = #tpu.pipeline_mode<synchronous>, transform_indices = @transform_4, window_bounds = array<i64: 32, 1>}, {pipeline_mode = #tpu.pipeline_mode<synchronous>, transform_indices = @transform_5, window_bounds = array<i64: 8, 32>}, {pipeline_mode = #tpu.pipeline_mode<synchronous>, transform_indices = @transform_6, window_bounds = array<i64: 8, 16>}, {pipeline_mode = #tpu.pipeline_mode<synchronous>, transform_indices = @transform_7, window_bounds = array<i64: 8, 1>}, {transform_indices = @transform_8, window_bounds = array<i64: 8, 128>}]} {
    %c0 = arith.constant 0 : index
    %c0_0 = arith.constant 0 : index
    %0 = vector.load %arg1[%c0, %c0_0] : memref<16x128xf32, #tpu.memory_space<vmem>>, vector<16x128xf32>
    %c0_1 = arith.constant 0 : index
    %c0_2 = arith.constant 0 : index
    %1 = vector.load %arg2[%c0_1, %c0_2] : memref<32x16xf32, #tpu.memory_space<vmem>>, vector<32x16xf32>
    %cst = arith.constant dense<0.000000e+00> : vector<32x128xf32>
    %2 = tpu.matmul %1, %0, %cst {dimension_numbers = #tpu.dot_dimension_numbers<[1], [0], [0], [1], [0, 0, 1, 1], [], []>} : vector<32x16xf32>, vector<16x128xf32>, vector<32x128xf32> -> vector<32x128xf32>
    %c0_3 = arith.constant 0 : index
    %c0_4 = arith.constant 0 : index
    %3 = vector.load %arg3[%c0_3, %c0_4] : memref<32x1xf32, #tpu.memory_space<vmem>>, vector<32x1xf32>
    %4 = vector.broadcast %3 : vector<32x1xf32> to vector<32x128xf32>
    %5 = arith.addf %2, %4 : vector<32x128xf32>
    %cst_5 = arith.constant dense<0.000000e+00> : vector<128xf32>
    %6 = vector.multi_reduction <add>, %5, %cst_5 [0] : vector<32x128xf32> to vector<128xf32>
    %7 = vector.shape_cast %6 : vector<128xf32> to vector<1x128xf32>
    %cst_6 = arith.constant 3.125000e-02 : f32
    %8 = vector.broadcast %cst_6 : f32 to vector<1x128xf32>
    %9 = arith.mulf %7, %8 : vector<1x128xf32>
    %10 = arith.mulf %5, %5 : vector<32x128xf32>
    %cst_7 = arith.constant dense<0.000000e+00> : vector<128xf32>
    %11 = vector.multi_reduction <add>, %10, %cst_7 [0] : vector<32x128xf32> to vector<128xf32>
    %12 = vector.shape_cast %11 : vector<128xf32> to vector<1x128xf32>
    %cst_8 = arith.constant 3.125000e-02 : f32
    %13 = vector.broadcast %cst_8 : f32 to vector<1x128xf32>
    %14 = arith.mulf %12, %13 : vector<1x128xf32>
    %15 = arith.mulf %9, %9 : vector<1x128xf32>
    %16 = arith.subf %14, %15 : vector<1x128xf32>
    %cst_9 = arith.constant 0.000000e+00 : f32
    %17 = vector.broadcast %cst_9 : f32 to vector<1x128xf32>
    %18 = arith.maximumf %16, %17 : vector<1x128xf32>
    %19 = vector.broadcast %9 : vector<1x128xf32> to vector<32x128xf32>
    %20 = arith.subf %5, %19 : vector<32x128xf32>
    %cst_10 = arith.constant 9.99999974E-6 : f32
    %21 = vector.broadcast %cst_10 : f32 to vector<1x128xf32>
    %22 = arith.addf %18, %21 : vector<1x128xf32>
    %23 = math.rsqrt %22 : vector<1x128xf32>
    %24 = vector.broadcast %23 : vector<1x128xf32> to vector<32x128xf32>
    %25 = arith.mulf %20, %24 : vector<32x128xf32>
    %c0_11 = arith.constant 0 : index
    %c0_12 = arith.constant 0 : index
    %26 = vector.load %arg4[%c0_11, %c0_12] : memref<32x1xf32, #tpu.memory_space<vmem>>, vector<32x1xf32>
    %27 = vector.broadcast %26 : vector<32x1xf32> to vector<32x128xf32>
    %28 = arith.mulf %25, %27 : vector<32x128xf32>
    %c0_13 = arith.constant 0 : index
    %c0_14 = arith.constant 0 : index
    %29 = vector.load %arg5[%c0_13, %c0_14] : memref<32x1xf32, #tpu.memory_space<vmem>>, vector<32x1xf32>
    %30 = vector.broadcast %29 : vector<32x1xf32> to vector<32x128xf32>
    %31 = arith.addf %28, %30 : vector<32x128xf32>
    %cst_15 = arith.constant 0.000000e+00 : f32
    %32 = vector.broadcast %cst_15 : f32 to vector<32x128xf32>
    %33 = arith.maximumf %31, %32 : vector<32x128xf32>
    %c0_16 = arith.constant 0 : index
    %c0_17 = arith.constant 0 : index
    %34 = vector.load %arg6[%c0_16, %c0_17] : memref<8x32xf32, #tpu.memory_space<vmem>>, vector<8x32xf32>
    %cst_18 = arith.constant dense<0.000000e+00> : vector<8x128xf32>
    %35 = tpu.matmul %34, %33, %cst_18 {dimension_numbers = #tpu.dot_dimension_numbers<[1], [0], [0], [1], [0, 0, 1, 1], [], []>} : vector<8x32xf32>, vector<32x128xf32>, vector<8x128xf32> -> vector<8x128xf32>
    %c0_19 = arith.constant 0 : index
    %c0_20 = arith.constant 0 : index
    %36 = vector.load %arg7[%c0_19, %c0_20] : memref<8x16xf32, #tpu.memory_space<vmem>>, vector<8x16xf32>
    %cst_21 = arith.constant dense<0.000000e+00> : vector<8x128xf32>
    %37 = tpu.matmul %36, %0, %cst_21 {dimension_numbers = #tpu.dot_dimension_numbers<[1], [0], [0], [1], [0, 0, 1, 1], [], []>} : vector<8x16xf32>, vector<16x128xf32>, vector<8x128xf32> -> vector<8x128xf32>
    %38 = arith.addf %35, %37 : vector<8x128xf32>
    %c0_22 = arith.constant 0 : index
    %c0_23 = arith.constant 0 : index
    %39 = vector.load %arg8[%c0_22, %c0_23] : memref<8x1xf32, #tpu.memory_space<vmem>>, vector<8x1xf32>
    %40 = vector.broadcast %39 : vector<8x1xf32> to vector<8x128xf32>
    %41 = arith.addf %38, %40 : vector<8x128xf32>
    %c0_24 = arith.constant 0 : index
    %c0_25 = arith.constant 0 : index
    %42 = vector.load %arg9[%c0_24, %c0_25] : memref<8x128xf32, #tpu.memory_space<vmem>>, vector<8x128xf32>
    tpu.vector_store %arg9[%c0_24, %c0_25], %41 {strides = array<i32>} : memref<8x128xf32, #tpu.memory_space<vmem>>, vector<8x128xf32>,
    return
  }
  func.func @transform_0(%arg0: i32) -> (i32, i32) {
    %c0_i32 = arith.constant 0 : i32
    %c0_i32_0 = arith.constant 0 : i32
    return %c0_i32, %arg0 : i32, i32
  }
  func.func @transform_1(%arg0: i32) -> (i32, i32) {
    %c0_i32 = arith.constant 0 : i32
    %c0_i32_0 = arith.constant 0 : i32
    %c0_i32_1 = arith.constant 0 : i32
    return %c0_i32, %c0_i32_0 : i32, i32
  }
  func.func @transform_2(%arg0: i32) -> (i32, i32) {
    %c0_i32 = arith.constant 0 : i32
    %c0_i32_0 = arith.constant 0 : i32
    %c0_i32_1 = arith.constant 0 : i32
    return %c0_i32, %c0_i32_0 : i32, i32
  }
  func.func @transform_3(%arg0: i32) -> (i32, i32) {
    %c0_i32 = arith.constant 0 : i32
    %c0_i32_0 = arith.constant 0 : i32
    %c0_i32_1 = arith.constant 0 : i32
    return %c0_i32, %c0_i32_0 : i32, i32
  }
  func.func @transform_4(%arg0: i32) -> (i32, i32) {
    %c0_i32 = arith.constant 0 : i32
    %c0_i32_0 = arith.constant 0 : i32
    %c0_i32_1 = arith.constant 0 : i32
    return %c0_i32, %c0_i32_0 : i32, i32
  }
  func.func @transform_5(%arg0: i32) -> (i32, i32) {
    %c0_i32 = arith.constant 0 : i32
    %c0_i32_0 = arith.constant 0 : i32
    %c0_i32_1 = arith.constant 0 : i32
    return %c0_i32, %c0_i32_0 : i32, i32
  }
  func.func @transform_6(%arg0: i32) -> (i32, i32) {
    %c0_i32 = arith.constant 0 : i32
    %c0_i32_0 = arith.constant 0 : i32
    %c0_i32_1 = arith.constant 0 : i32
    return %c0_i32, %c0_i32_0 : i32, i32
  }
  func.func @transform_7(%arg0: i32) -> (i32, i32) {
    %c0_i32 = arith.constant 0 : i32
    %c0_i32_0 = arith.constant 0 : i32
    %c0_i32_1 = arith.constant 0 : i32
    return %c0_i32, %c0_i32_0 : i32, i32
  }
  func.func @transform_8(%arg0: i32) -> (i32, i32) {
    %c0_i32 = arith.constant 0 : i32
    %c0_i32_0 = arith.constant 0 : i32
    return %c0_i32, %arg0 : i32, i32
  }
}

</mosaic_0001>

<llo_original>
// kernel: mlp_forward.1
$region0: #{mlp_forward.1}
  #allocation0 [shape = 'u32[]', space=smem, size = 0x4, offset = 0x4, fixed_abs, tag = 'smem constant byte address 0x4 - core index']
  #allocation1 [shape = 'u32[144,128]{1,0:T(1,128)}', space=vmem, size = 0x12000, scoped, tag = 'internal scratch']
  %s0 = inlined_call_operand.vmem [shape: f32[16,128], index: 0, kind: input, shape index: {}]
  %s1 = inlined_call_operand.vmem [shape: f32[32,16], index: 1, kind: input, shape index: {}]
  %s2 = inlined_call_operand.vmem [shape: f32[32,1], index: 2, kind: input, shape index: {}]
  %s3 = inlined_call_operand.vmem [shape: f32[32,1], index: 3, kind: input, shape index: {}]
  %s4 = inlined_call_operand.vmem [shape: f32[32,1], index: 4, kind: input, shape index: {}]
  %s5 = inlined_call_operand.vmem [shape: f32[8,32], index: 5, kind: input, shape index: {}]
  %s6 = inlined_call_operand.vmem [shape: f32[8,16], index: 6, kind: input, shape index: {}]
  %s7 = inlined_call_operand.vmem [shape: f32[8,1], index: 7, kind: input, shape index: {}]
  %s8 = inlined_call_operand.vmem [shape: f32[8,128], index: 8, kind: output, shape index: {}]
  %s9 = sld [smem:[#allocation0]]
  $region42: #{mlp_forward.1} parent=0
    _
  %s11 = ssub.s32 1, %s9
  %s12 = scalar_select 0, %s11, %s9
  // Predicated region
  $region2: #{mlp_forward.1} parent=0 // pred_check
    _
  $region3: #{mlp_forward.1} parent=0 // pred_check_branch
    %14 = sbr.rel (0) target = $region5
  $region4: #{mlp_forward.1} parent=0 // pred_region
    _
  $region5: #{mlp_forward.1} parent=0 // pred_fallthru
    _
  // Predicated region
  $region6: #{mlp_forward.1} parent=0 // pred_check
    _
  $region7: #{mlp_forward.1} parent=0 // pred_check_branch
    %16 = sbr.rel (0) target = $region9
  $region8: #{mlp_forward.1} parent=0 // pred_region
    _
  $region9: #{mlp_forward.1} parent=0 // pred_fallthru
    _
  // Predicated region
  $region10: #{mlp_forward.1} parent=0 // pred_check
    _
  $region11: #{mlp_forward.1} parent=0 // pred_check_branch
    %18 = sbr.rel (0) target = $region13
  $region12: #{mlp_forward.1} parent=0 // pred_region
    _
  $region13: #{mlp_forward.1} parent=0 // pred_fallthru
    _
  // Predicated region
  $region14: #{mlp_forward.1} parent=0 // pred_check
    _
  $region15: #{mlp_forward.1} parent=0 // pred_check_branch
    %20 = sbr.rel (0) target = $region17
  $region16: #{mlp_forward.1} parent=0 // pred_region
    _
  $region17: #{mlp_forward.1} parent=0 // pred_fallthru
    _
  // Predicated region
  $region18: #{mlp_forward.1} parent=0 // pred_check
    _
  $region19: #{mlp_forward.1} parent=0 // pred_check_branch
    %22 = sbr.rel (0) target = $region21
  $region20: #{mlp_forward.1} parent=0 // pred_region
    _
  $region21: #{mlp_forward.1} parent=0 // pred_fallthru
    _
  // Predicated region
  $region22: #{mlp_forward.1} parent=0 // pred_check
    _
  $region23: #{mlp_forward.1} parent=0 // pred_check_branch
    %24 = sbr.rel (0) target = $region25
  $region24: #{mlp_forward.1} parent=0 // pred_region
    _
  $region25: #{mlp_forward.1} parent=0 // pred_fallthru
    _
  // Predicated region
  $region26: #{mlp_forward.1} parent=0 // pred_check
    _
  $region27: #{mlp_forward.1} parent=0 // pred_check_branch
    %26 = sbr.rel (0) target = $region29
  $region28: #{mlp_forward.1} parent=0 // pred_region
    _
  $region29: #{mlp_forward.1} parent=0 // pred_fallthru
    _
  // Predicated region
  $region30: #{mlp_forward.1} parent=0 // pred_check
    _
  $region31: #{mlp_forward.1} parent=0 // pred_check_branch
    %28 = sbr.rel (0) target = $region33
  $region32: #{mlp_forward.1} parent=0 // pred_region
    _
  $region33: #{mlp_forward.1} parent=0 // pred_fallthru
    _
  %v29 = vld [vmem:[%s0] sm:$0xff]
  %v30 = vld [vmem:[%s0 + $0x8] sm:$0xff]
  %v31 = vld [vmem:[%s1] sm:$0xff]
  %v32 = vld [vmem:[%s1 + $0x8] sm:$0xff]
  %v33 = vld [vmem:[%s1 + $0x10] sm:$0xff]
  %v34 = vld [vmem:[%s1 + $0x18] sm:$0xff]
  %v35 = vld [vmem:[%s2] sm:$0xff]
  %v36 = vld [vmem:[%s2 + $0x8] sm:$0xff]
  %v37 = vld [vmem:[%s2 + $0x10] sm:$0xff]
  %v38 = vld [vmem:[%s2 + $0x18] sm:$0xff]
  %40 = vset.pattern.permute.xlu0 0
  %41 = vperm.xlu0 %40, %v35
  %v42 = vpop.permute.xlu0 %41
  %45 = vset.pattern.permute.xlu0 0
  %46 = vperm.xlu0 %45, %v36
  %v47 = vpop.permute.xlu0 %46
  %50 = vset.pattern.permute.xlu0 0
  %51 = vperm.xlu0 %50, %v37
  %v52 = vpop.permute.xlu0 %51
  %55 = vset.pattern.permute.xlu0 0
  %56 = vperm.xlu0 %55, %v38
  %v57 = vpop.permute.xlu0 %56
  %vm59 = vcmask 130048
  %v61 = vsel %vm59, %v31, 0
  %v64 = vsel %vm59, %v32, 0
  %v67 = vsel %vm59, %v33, 0
  %v70 = vsel %vm59, %v34, 0
  %72 = vmatprep.subr.mxu0 0.0
  %73 = vmatpush1.msra.mxu0 %v29
  %74 = vmatprep.subr.mxu0 0.0
  %75 = vmatpush1.msra.mxu0 %v30
  %76 = vmatprep.subr.mxu0 0.0
  %77 = vmatpush1.msra.mxu0 0.0
  %78 = vmatprep.subr.mxu0 0.0
  %79 = vmatpush1.msra.mxu0 0.0
  %80 = vmatprep.subr.mxu0 0.0
  %81 = vmatpush1.msra.mxu0 0.0
  %82 = vmatprep.subr.mxu0 0.0
  %83 = vmatpush1.msra.mxu0 0.0
  %84 = vmatprep.subr.mxu0 0.0
  %85 = vmatpush1.msra.mxu0 0.0
  %86 = vmatprep.subr.mxu0 0.0
  %87 = vmatpush1.msra.mxu0 0.0
  %88 = vmatprep.subr.mxu0 0.0
  %89 = vmatpush1.msra.mxu0 0.0
  %90 = vmatprep.subr.mxu0 0.0
  %91 = vmatpush1.msra.mxu0 0.0
  %92 = vmatprep.subr.mxu0 0.0
  %93 = vmatpush1.msra.mxu0 0.0
  %94 = vmatprep.subr.mxu0 0.0
  %95 = vmatpush1.msra.mxu0 0.0
  %96 = vmatprep.subr.mxu0 0.0
  %97 = vmatpush1.msra.mxu0 0.0
  %98 = vmatprep.subr.mxu0 0.0
  %99 = vmatpush1.msra.mxu0 0.0
  %100 = vmatprep.subr.mxu0 0.0
  %101 = vmatpush1.msra.mxu0 0.0
  %102 = vmatprep.subr.mxu0 0.0
  %103 = vmatpush1.msra.mxu0 0.0
  %104 = vmatprep.subr.mxu0 0.0
  %105 = vmatpush1.msra.mxu0 0.0
  %106 = vmatprep.subr.mxu0 0.0
  %107 = vmatpush1.msra.mxu0 0.0
  %108 = vmatprep.subr.mxu0 0.0
  %109 = vmatpush1.msra.mxu0 0.0
  %110 = vmatprep.subr.mxu0 0.0
  %111 = vmatpush1.msra.mxu0 0.0
  %112 = vmatprep.subr.mxu0 0.0
  %113 = vmatpush1.msra.mxu0 0.0
  %114 = vmatprep.subr.mxu0 0.0
  %115 = vmatpush1.msra.mxu0 0.0
  %116 = vmatprep.subr.mxu0 0.0
  %117 = vmatpush1.msra.mxu0 0.0
  %118 = vmatprep.subr.mxu0 0.0
  %119 = vmatpush1.msra.mxu0 0.0
  %120 = vmatprep.subr.mxu0 0.0
  %121 = vmatpush1.msra.mxu0 0.0
  %122 = vmatprep.subr.mxu0 0.0
  %123 = vmatpush1.msra.mxu0 0.0
  %124 = vmatprep.subr.mxu0 0.0
  %125 = vmatpush1.msra.mxu0 0.0
  %126 = vmatprep.subr.mxu0 0.0
  %127 = vmatpush1.msra.mxu0 0.0
  %128 = vmatprep.subr.mxu0 0.0
  %129 = vmatpush1.msra.mxu0 0.0
  %130 = vmatprep.subr.mxu0 0.0
  %131 = vmatpush1.msra.mxu0 0.0
  %132 = vmatprep.subr.mxu0 0.0
  %133 = vmatpush1.msra.mxu0 0.0
  %134 = vmatprep.subr.mxu0 0.0
  %135 = vmatpush1.msra.mxu0 0.0
  %136 = vmatprep.mubr.f32.mxu0 0.0
  %137 = vmatmul.mubr.f32.gmra.mrb[0].mxu0 %v61
  %v138 = vpop.f32.mrb[0].mxu0
  %v139 = vadd.f32 %v42, %v138
  %v140 = vpop.f32.mrb[0].mxu0
  %141 = vmatprep.mubr.f32.mxu0 0.0
  %142 = vmatmul.mubr.f32.gmra.mrb[0].mxu0 %v64
  %v143 = vpop.f32.mrb[0].mxu0
  %v144 = vadd.f32 %v47, %v143
  %v145 = vpop.f32.mrb[0].mxu0
  %146 = vmatprep.mubr.f32.mxu0 0.0
  %147 = vmatmul.mubr.f32.gmra.mrb[0].mxu0 %v67
  %v148 = vpop.f32.mrb[0].mxu0
  %v149 = vadd.f32 %v52, %v148
  %v150 = vpop.f32.mrb[0].mxu0
  %151 = vmatprep.mubr.f32.mxu0 0.0
  %152 = vmatmul.mubr.f32.gmra.mrb[0].mxu0 %v70
  %v153 = vpop.f32.mrb[0].mxu0
  %v154 = vadd.f32 %v57, %v153
  %v155 = vpop.f32.mrb[0].mxu0
  %156 = vdwg.mxu0
  %v157 = vadd.f32 %v139, %v144
  %v158 = vadd.f32 %v157, %v149
  %v159 = vadd.f32 %v158, %v154
  %v160 = vrot.slane %v159, 4
  %v161 = vadd.f32 %v159, %v160
  %v162 = vrot.slane %v161, 2
  %v163 = vadd.f32 %v161, %v162
  %v164 = vrot.slane %v163, 1
  %v165 = vadd.f32 %v163, %v164
  %v166 = vmul.f32 %v165, 0.03125
  %v167 = vmul.f32 %v139, %v139
  %v168 = vmul.f32 %v144, %v144
  %v169 = vmul.f32 %v149, %v149
  %v170 = vmul.f32 %v154, %v154
  %v171 = vadd.f32 %v167, %v168
  %v172 = vadd.f32 %v171, %v169
  %v173 = vadd.f32 %v172, %v170
  %v174 = vrot.slane %v173, 4
  %v175 = vadd.f32 %v173, %v174
  %v176 = vrot.slane %v175, 2
  %v177 = vadd.f32 %v175, %v176
  %v178 = vrot.slane %v177, 1
  %v179 = vadd.f32 %v177, %v178
  %v180 = vmul.f32 %v179, 0.03125
  %v181 = vmul.f32 %v166, %v166
  %v182 = vsub.f32 %v180, %v181
  %v183 = vmax.f32 %v182, 0.0
  %v184 = vsub.f32 %v139, %v166
  %v185 = vsub.f32 %v144, %v166
  %v186 = vsub.f32 %v149, %v166
  %v187 = vsub.f32 %v154, %v166
  %v188 = vadd.f32 %v183, 1e-05
  %v189 = vrsqrt.pop %v188
  %v190 = vmul.f32 %v184, %v189
  %v191 = vmul.f32 %v185, %v189
  %v192 = vmul.f32 %v186, %v189
  %v193 = vmul.f32 %v187, %v189
  %v194 = vld [vmem:[%s3] sm:$0xff]
  %v195 = vld [vmem:[%s3 + $0x8] sm:$0xff]
  %v196 = vld [vmem:[%s3 + $0x10] sm:$0xff]
  %v197 = vld [vmem:[%s3 + $0x18] sm:$0xff]
  %199 = vset.pattern.permute.xlu0 0
  %200 = vperm.xlu0 %199, %v194
  %v201 = vpop.permute.xlu0 %200
  %204 = vset.pattern.permute.xlu0 0
  %205 = vperm.xlu0 %204, %v195
  %v206 = vpop.permute.xlu0 %205
  %209 = vset.pattern.permute.xlu0 0
  %210 = vperm.xlu0 %209, %v196
  %v211 = vpop.permute.xlu0 %210
  %214 = vset.pattern.permute.xlu0 0
  %215 = vperm.xlu0 %214, %v197
  %v216 = vpop.permute.xlu0 %215
  %v218 = vmul.f32 %v190, %v201
  %v219 = vmul.f32 %v191, %v206
  %v220 = vmul.f32 %v192, %v211
  %v221 = vmul.f32 %v193, %v216
  %v222 = vld [vmem:[%s4] sm:$0xff]
  %v223 = vld [vmem:[%s4 + $0x8] sm:$0xff]
  %v224 = vld [vmem:[%s4 + $0x10] sm:$0xff]
  %v225 = vld [vmem:[%s4 + $0x18] sm:$0xff]
  %227 = vset.pattern.permute.xlu0 0
  %228 = vperm.xlu0 %227, %v222
  %v229 = vpop.permute.xlu0 %228
  %232 = vset.pattern.permute.xlu0 0
  %233 = vperm.xlu0 %232, %v223
  %v234 = vpop.permute.xlu0 %233
  %237 = vset.pattern.permute.xlu0 0
  %238 = vperm.xlu0 %237, %v224
  %v239 = vpop.permute.xlu0 %238
  %242 = vset.pattern.permute.xlu0 0
  %243 = vperm.xlu0 %242, %v225
  %v244 = vpop.permute.xlu0 %243
  %v246 = vadd.f32 %v218, %v229
  %v247 = vadd.f32 %v219, %v234
  %v248 = vadd.f32 %v220, %v239
  %v249 = vadd.f32 %v221, %v244
  %v250 = vmax.f32 %v246, 0.0
  %v251 = vmax.f32 %v247, 0.0
  %v252 = vmax.f32 %v248, 0.0
  %v253 = vmax.f32 %v249, 0.0
  %v254 = vld [vmem:[%s5] sm:$0xff]
  %v255 = vld [vmem:[%s6] sm:$0xff]
  %v257 = vsel %vm59, %v255, 0
  %259 = vmatprep.subr.mxu0 0.0
  %260 = vmatpush1.msra.mxu0 %v29
  %261 = vmatprep.subr.mxu0 0.0
  %262 = vmatpush1.msra.mxu0 %v30
  %263 = vmatprep.subr.mxu0 0.0
  %264 = vmatpush1.msra.mxu0 0.0
  %265 = vmatprep.subr.mxu0 0.0
  %266 = vmatpush1.msra.mxu0 0.0
  %267 = vmatprep.subr.mxu0 0.0
  %268 = vmatpush1.msra.mxu0 0.0
  %269 = vmatprep.subr.mxu0 0.0
  %270 = vmatpush1.msra.mxu0 0.0
  %271 = vmatprep.subr.mxu0 0.0
  %272 = vmatpush1.msra.mxu0 0.0
  %273 = vmatprep.subr.mxu0 0.0
  %274 = vmatpush1.msra.mxu0 0.0
  %275 = vmatprep.subr.mxu0 0.0
  %276 = vmatpush1.msra.mxu0 0.0
  %277 = vmatprep.subr.mxu0 0.0
  %278 = vmatpush1.msra.mxu0 0.0
  %279 = vmatprep.subr.mxu0 0.0
  %280 = vmatpush1.msra.mxu0 0.0
  %281 = vmatprep.subr.mxu0 0.0
  %282 = vmatpush1.msra.mxu0 0.0
  %283 = vmatprep.subr.mxu0 0.0
  %284 = vmatpush1.msra.mxu0 0.0
  %285 = vmatprep.subr.mxu0 0.0
  %286 = vmatpush1.msra.mxu0 0.0
  %287 = vmatprep.subr.mxu0 0.0
  %288 = vmatpush1.msra.mxu0 0.0
  %289 = vmatprep.subr.mxu0 0.0
  %290 = vmatpush1.msra.mxu0 0.0
  %291 = vmatprep.subr.mxu0 0.0
  %292 = vmatpush1.msra.mxu0 0.0
  %293 = vmatprep.subr.mxu0 0.0
  %294 = vmatpush1.msra.mxu0 0.0
  %295 = vmatprep.subr.mxu0 0.0
  %296 = vmatpush1.msra.mxu0 0.0
  %297 = vmatprep.subr.mxu0 0.0
  %298 = vmatpush1.msra.mxu0 0.0
  %299 = vmatprep.subr.mxu0 0.0
  %300 = vmatpush1.msra.mxu0 0.0
  %301 = vmatprep.subr.mxu0 0.0
  %302 = vmatpush1.msra.mxu0 0.0
  %303 = vmatprep.subr.mxu0 0.0
  %304 = vmatpush1.msra.mxu0 0.0
  %305 = vmatprep.subr.mxu0 0.0
  %306 = vmatpush1.msra.mxu0 0.0
  %307 = vmatprep.subr.mxu0 0.0
  %308 = vmatpush1.msra.mxu0 0.0
  %309 = vmatprep.subr.mxu0 0.0
  %310 = vmatpush1.msra.mxu0 0.0
  %311 = vmatprep.subr.mxu0 0.0
  %312 = vmatpush1.msra.mxu0 0.0
  %313 = vmatprep.subr.mxu0 0.0
  %314 = vmatpush1.msra.mxu0 0.0
  %315 = vmatprep.subr.mxu0 0.0
  %316 = vmatpush1.msra.mxu0 0.0
  %317 = vmatprep.subr.mxu0 0.0
  %318 = vmatpush1.msra.mxu0 0.0
  %319 = vmatprep.subr.mxu0 0.0
  %320 = vmatpush1.msra.mxu0 0.0
  %321 = vmatprep.subr.mxu0 0.0
  %322 = vmatpush1.msra.mxu0 0.0
  %323 = vmatprep.mubr.f32.mxu0 0.0
  %324 = vmatmul.mubr.f32.gmra.mrb[0].mxu0 %v257
  %v325 = vpop.f32.mrb[0].mxu0
  %v326 = vadd.f32 0.0, %v325
  %v327 = vpop.f32.mrb[0].mxu0
  %328 = vdwg.mxu0
  %vm329 = vcmask 261120
  %v331 = vsel %vm329, %v254, 0
  %333 = vmatprep.subr.mxu0 0.0
  %334 = vmatpush1.msra.mxu0 %v250
  %335 = vmatprep.subr.mxu0 0.0
  %336 = vmatpush1.msra.mxu0 %v251
  %337 = vmatprep.subr.mxu0 0.0
  %338 = vmatpush1.msra.mxu0 %v252
  %339 = vmatprep.subr.mxu0 0.0
  %340 = vmatpush1.msra.mxu0 %v253
  %341 = vmatprep.subr.mxu0 0.0
  %342 = vmatpush1.msra.mxu0 0.0
  %343 = vmatprep.subr.mxu0 0.0
  %344 = vmatpush1.msra.mxu0 0.0
  %345 = vmatprep.subr.mxu0 0.0
  %346 = vmatpush1.msra.mxu0 0.0
  %347 = vmatprep.subr.mxu0 0.0
  %348 = vmatpush1.msra.mxu0 0.0
  %349 = vmatprep.subr.mxu0 0.0
  %350 = vmatpush1.msra.mxu0 0.0
  %351 = vmatprep.subr.mxu0 0.0
  %352 = vmatpush1.msra.mxu0 0.0
  %353 = vmatprep.subr.mxu0 0.0
  %354 = vmatpush1.msra.mxu0 0.0
  %355 = vmatprep.subr.mxu0 0.0
  %356 = vmatpush1.msra.mxu0 0.0
  %357 = vmatprep.subr.mxu0 0.0
  %358 = vmatpush1.msra.mxu0 0.0
  %359 = vmatprep.subr.mxu0 0.0
  %360 = vmatpush1.msra.mxu0 0.0
  %361 = vmatprep.subr.mxu0 0.0
  %362 = vmatpush1.msra.mxu0 0.0
  %363 = vmatprep.subr.mxu0 0.0
  %364 = vmatpush1.msra.mxu0 0.0
  %365 = vmatprep.subr.mxu0 0.0
  %366 = vmatpush1.msra.mxu0 0.0
  %367 = vmatprep.subr.mxu0 0.0
  %368 = vmatpush1.msra.mxu0 0.0
  %369 = vmatprep.subr.mxu0 0.0
  %370 = vmatpush1.msra.mxu0 0.0
  %371 = vmatprep.subr.mxu0 0.0
  %372 = vmatpush1.msra.mxu0 0.0
  %373 = vmatprep.subr.mxu0 0.0
  %374 = vmatpush1.msra.mxu0 0.0
  %375 = vmatprep.subr.mxu0 0.0
  %376 = vmatpush1.msra.mxu0 0.0
  %377 = vmatprep.subr.mxu0 0.0
  %378 = vmatpush1.msra.mxu0 0.0
  %379 = vmatprep.subr.mxu0 0.0
  %380 = vmatpush1.msra.mxu0 0.0
  %381 = vmatprep.subr.mxu0 0.0
  %382 = vmatpush1.msra.mxu0 0.0
  %383 = vmatprep.subr.mxu0 0.0
  %384 = vmatpush1.msra.mxu0 0.0
  %385 = vmatprep.subr.mxu0 0.0
  %386 = vmatpush1.msra.mxu0 0.0
  %387 = vmatprep.subr.mxu0 0.0
  %388 = vmatpush1.msra.mxu0 0.0
  %389 = vmatprep.subr.mxu0 0.0
  %390 = vmatpush1.msra.mxu0 0.0
  %391 = vmatprep.subr.mxu0 0.0
  %392 = vmatpush1.msra.mxu0 0.0
  %393 = vmatprep.subr.mxu0 0.0
  %394 = vmatpush1.msra.mxu0 0.0
  %395 = vmatprep.subr.mxu0 0.0
  %396 = vmatpush1.msra.mxu0 0.0
  %397 = vmatprep.mubr.f32.mxu0 0.0
  %398 = vmatmul.mubr.f32.gmra.mrb[0].mxu0 %v331
  %v399 = vpop.f32.mrb[0].mxu0
  %v400 = vadd.f32 %v326, %v399
  %v401 = vpop.f32.mrb[0].mxu0
  %402 = vdwg.mxu0
  %v403 = vld [vmem:[%s7] sm:$0xff]
  %405 = vset.pattern.permute.xlu0 0
  %406 = vperm.xlu0 %405, %v403
  %v407 = vpop.permute.xlu0 %406
  %v409 = vadd.f32 %v400, %v407
  %410 = vst [vmem:[%s8] sm:$0xff] %v409
  // Predicated region
  $region34: #{mlp_forward.1} parent=0 // pred_check
    _
  $region35: #{mlp_forward.1} parent=0 // pred_check_branch
    %412 = sbr.rel (0) target = $region37
  $region36: #{mlp_forward.1} parent=0 // pred_region
    _
  $region37: #{mlp_forward.1} parent=0 // pred_fallthru
    _
  // Predicated region
  $region38: #{mlp_forward.1} parent=0 // pred_check
    _
  $region39: #{mlp_forward.1} parent=0 // pred_check_branch
    %414 = sbr.rel (0) target = $region41
  $region40: #{mlp_forward.1} parent=0 // pred_region
    _
  $region41: #{mlp_forward.1} parent=0 // pred_fallthru
    _

</llo_original>
